<compile_context>
chip_gen: v6e
topology: v6e:2x2x1
jax: 0.10.0
libtpu: 0.0.40
codegen_flags: <defaults>
</compile_context>

<pallas_src>
import functools

import jax
import jax.numpy as jnp
from jax.experimental import pallas as pl
from jax.experimental.pallas import tpu as pltpu


LANE = 128
SUBLANE = 8


def _round_up(x, m):
    return (x + m - 1) // m * m


def _conv1d_linear_kernel(x_ref, halo_ref, w1_ref, b1_ref, w2_ref, b2_ref,
                          o_ref, *, K, tT, halo):
    """One (batch, time-tile) grid step.

    x_ref    : (1, tT, C_pad)    current padded-input time tile (bf16)
    halo_ref : (1, halo, C_pad)  the `halo` rows following the tile (bf16)
    w1_ref   : (K*C_pad, H_pad)  fused conv weights, row k*C_pad+c = w1[h,c,k] (bf16)
    b1_ref   : (1, H_pad)        conv bias (f32)
    w2_ref   : (H_pad, C_pad)    linear weight, transposed (bf16)
    b2_ref   : (1, C_pad)        linear bias (f32)
    o_ref    : (1, tT, C_pad)
    """
    x = x_ref[0]                                   # (tT, C_pad) bf16
    taps = [x]
    if K > 1:
        # f32 slab (sublane-unpacked) so per-tap sublane rotations are cheap and
        # layout-safe; bf16 -> f32 -> bf16 round trip is exact.
        slab = jnp.concatenate(
            [x.astype(jnp.float32), halo_ref[0].astype(jnp.float32)], axis=0)
        L = tT + halo
        for k in range(1, K):
            # rows shifted by k: roll(slab, L-k)[i] == slab[i+k].  XLU work,
            # overlapped with / hidden under the MXU matmuls.
            shifted = pltpu.roll(slab, L - k, axis=0)[:tT, :]
            taps.append(shifted.astype(x.dtype))
    # In-register im2col: lane-aligned concat (each piece is a multiple of 128
    # lanes) -> one MXU matmul with a K*C_pad contraction, f32 accumulation.
    lhs = taps[0] if K == 1 else jnp.concatenate(taps, axis=-1)
    h = jnp.dot(lhs, w1_ref[...], preferred_element_type=jnp.float32)
    # Bias + ReLU in f32 on the VPU (v5e-safe).
    h = jnp.maximum(h + b1_ref[...], 0.0)
    # Dropout == identity (inference). Linear hidden -> in_chans on the MXU.
    y = jnp.dot(h.astype(w2_ref.dtype), w2_ref[...],
                preferred_element_type=jnp.float32)
    o_ref[0] = (y + b2_ref[...]).astype(o_ref.dtype)


def conv1d_linear(x, w1, b1, w2, b2, kernel_size, *, time_tile=512):
    """Conv1dLinear forward.

    x  : (B, T, C_in)
    w1 : (H, C_in, K)   torch Conv1d weight layout
    b1 : (H,)
    w2 : (C_in, H)      torch Linear weight layout
    b2 : (C_in,)
    """
    B, T, C_in = x.shape
    H = w1.shape[0]
    K = kernel_size
    # padding=(K-1)//2 only gives "same"-length output for odd K (torch yields
    # length T-1 for even K).
    assert K % 2 == 1, "Conv1dLinear kernel requires odd kernel_size"
    pad = (K - 1) // 2

    # Lane-dense channel padding (multiples of 128).
    C_pad = _round_up(C_in, LANE)
    H_pad = _round_up(H, LANE)

    # Halo rows needed past each tile, rounded to a sublane multiple so the halo
    # BlockSpec stays block-aligned.
    halo = max(SUBLANE, _round_up(K - 1, SUBLANE))

    # Time tile: multiple of `halo`; shrink until resident weights (double
    # buffered) + per-tile f32 intermediates fit comfortably in scoped VMEM on
    # every chip generation (v5e default 16 MiB, v7x physical 64 MiB).
    weight_vmem = 2 * 2 * (K * C_pad * H_pad + H_pad * C_pad)      # bf16, x2 buf
    act_bytes_per_row = (16 + 6 * K) * C_pad + 6 * H_pad           # f32/bf16 mix
    tT = min(time_tile, _round_up(max(T, SUBLANE), SUBLANE))
    tT = max(halo, _round_up(tT, halo))
    while tT > halo and weight_vmem + tT * act_bytes_per_row > (12 << 20):
        tT = max(halo, _round_up(tT // 2, halo))

    T_pad = _round_up(T, tT)
    nT = T_pad // tT
    T_halo = T_pad + halo

    compute_dtype = jnp.bfloat16

    # ---- plain-JAX glue: pad + cast input, re-layout weights --------------------
    # Zero-pad time (left `pad` for "same" conv, right up to T_pad + halo) and
    # channels; single bf16 copy in HBM, read once by the kernel.
    x_p = jnp.pad(
        x, ((0, 0), (pad, T_halo - pad - T), (0, C_pad - C_in))
    ).astype(compute_dtype)                                   # (B, T_halo, C_pad)

    # Conv weight (H, C_in, K) -> (K, C_in, H) -> pad -> (K*C_pad, H_pad)
    w1_t = jnp.transpose(w1, (2, 1, 0))
    w1_t = jnp.pad(w1_t, ((0, 0), (0, C_pad - C_in), (0, H_pad - H)))
    w1_k = w1_t.reshape(K * C_pad, H_pad).astype(compute_dtype)
    b1_k = jnp.pad(b1, (0, H_pad - H)).reshape(1, H_pad).astype(jnp.float32)

    # Linear weight (C_in, H) -> (H, C_in) -> pad -> (H_pad, C_pad)
    w2_k = jnp.pad(jnp.transpose(w2, (1, 0)),
                   ((0, H_pad - H), (0, C_pad - C_in))).astype(compute_dtype)
    b2_k = jnp.pad(b2, (0, C_pad - C_in)).reshape(1, C_pad).astype(jnp.float32)

    kernel = functools.partial(_conv1d_linear_kernel, K=K, tT=tT, halo=halo)

    flops = 2 * B * T_pad * (K * C_pad * H_pad + H_pad * C_pad)
    bytes_accessed = int(
        x_p.size * 2 * (1.0 + halo / tT)        # main tiles + halo blocks (bf16)
        + (w1_k.size + w2_k.size) * 2
        + B * T_pad * C_pad * x.dtype.itemsize  # output
    )

    hblk = tT // halo  # halo block index stride per time tile

    # ---- pallas_call ------------------------------------------------------------
    out = pl.pallas_call(
        kernel,
        out_shape=jax.ShapeDtypeStruct((B, T_pad, C_pad), x.dtype),
        grid_spec=pltpu.PrefetchScalarGridSpec(
            num_scalar_prefetch=0,
            grid=(B, nT),
            in_specs=[
                # current time tile
                pl.BlockSpec((1, tT, C_pad), lambda b, t: (b, t, 0)),
                # halo rows immediately after the tile (same padded array)
                pl.BlockSpec((1, halo, C_pad), lambda b, t: (b, (t + 1) * hblk, 0)),
                pl.BlockSpec((K * C_pad, H_pad), lambda b, t: (0, 0)),
                pl.BlockSpec((1, H_pad), lambda b, t: (0, 0)),
                pl.BlockSpec((H_pad, C_pad), lambda b, t: (0, 0)),
                pl.BlockSpec((1, C_pad), lambda b, t: (0, 0)),
            ],
            out_specs=pl.BlockSpec((1, tT, C_pad), lambda b, t: (b, t, 0)),
        ),
        compiler_params=pltpu.CompilerParams(
            dimension_semantics=("parallel", "parallel"),
        ),
        cost_estimate=pl.CostEstimate(
            flops=int(flops), transcendentals=0, bytes_accessed=bytes_accessed),
    )(x_p, x_p, w1_k, b1_k, w2_k, b2_k)

    # Strip channel / time padding.
    return out[:, :T, :C_in]


def _reference(x, w1, b1, w2, b2, kernel_size):
    """Plain-JAX f32 reference mirroring torch.nn.Conv1d + Linear."""
    pad = (kernel_size - 1) // 2
    x_ncl = jnp.transpose(x, (0, 2, 1))
    h = jax.lax.conv_general_dilated(
        x_ncl, w1, window_strides=(1,), padding=[(pad, pad)],
        dimension_numbers=("NCH", "OIH", "NCH"),
    ) + b1[None, :, None]
    h = jnp.maximum(h, 0.0)
    h = jnp.transpose(h, (0, 2, 1))
    return h @ w2.T + b2


if __name__ == "__main__":
    B, T = 2, 16
    in_chans, hidden_chans, kernel_size = 32, 64, 3

    key = jax.random.PRNGKey(0)
    k_x, k_w1, k_b1, k_w2, k_b2 = jax.random.split(key, 5)

    x = jax.random.normal(k_x, (B, T, in_chans), dtype=jnp.float32)
    # torch layouts: Conv1d weight (H, C_in, K), Linear weight (C_in, H)
    w1 = 0.1 * jax.random.normal(k_w1, (hidden_chans, in_chans, kernel_size), jnp.float32)
    b1 = 0.1 * jax.random.normal(k_b1, (hidden_chans,), jnp.float32)
    w2 = 0.1 * jax.random.normal(k_w2, (in_chans, hidden_chans), jnp.float32)
    b2 = 0.1 * jax.random.normal(k_b2, (in_chans,), jnp.float32)

    y_ref = _reference(x, w1, b1, w2, b2, kernel_size)

    # Default tiling (single time tile at this size).
    y = jax.block_until_ready(conv1d_linear(x, w1, b1, w2, b2, kernel_size))
    assert y.shape == (B, T, in_chans)
    # bf16 compute / f32 accumulation vs full-f32 reference -> loose tolerance.
    assert jnp.allclose(y, y_ref, atol=3e-2, rtol=3e-2), "mismatch vs reference"

    # Small time tile to exercise the cross-tile halo path.
    y2 = jax.block_until_ready(
        conv1d_linear(x, w1, b1, w2, b2, kernel_size, time_tile=8))
    assert jnp.allclose(y2, y_ref, atol=3e-2, rtol=3e-2), "mismatch (tiled halo)"

    print("KERNEL_OK")
</pallas_src>

<mosaic_0001>
module attributes {stable_mosaic.version = 11 : i64} {
  func.func @_conv1d_linear_kernel(%arg0: i32, %arg1: i32, %arg2: memref<1x16x128xbf16, #tpu.memory_space<vmem>>, %arg3: memref<1x8x128xbf16, #tpu.memory_space<vmem>>, %arg4: memref<384x128xbf16, #tpu.memory_space<vmem>>, %arg5: memref<1x128xf32, #tpu.memory_space<vmem>>, %arg6: memref<128x128xbf16, #tpu.memory_space<vmem>>, %arg7: memref<1x128xf32, #tpu.memory_space<vmem>>, %arg8: memref<1x16x128xf32, #tpu.memory_space<vmem>>) attributes {dimension_semantics = [#tpu.dimension_semantics<parallel>, #tpu.dimension_semantics<parallel>], iteration_bounds = array<i64: 2, 1>, scalar_prefetch = 0 : i64, scratch_operands = 0 : i64, tpu.core_type = #tpu.core_type<tc>, window_params = [{transform_indices = @transform_0, window_bounds = array<i64: 1, 16, 128>}, {transform_indices = @transform_1, window_bounds = array<i64: 1, 8, 128>}, {pipeline_mode = #tpu.pipeline_mode<synchronous>, transform_indices = @transform_2, window_bounds = array<i64: 384, 128>}, {pipeline_mode = #tpu.pipeline_mode<synchronous>, transform_indices = @transform_3, window_bounds = array<i64: 1, 128>}, {pipeline_mode = #tpu.pipeline_mode<synchronous>, transform_indices = @transform_4, window_bounds = array<i64: 128, 128>}, {pipeline_mode = #tpu.pipeline_mode<synchronous>, transform_indices = @transform_5, window_bounds = array<i64: 1, 128>}, {transform_indices = @transform_6, window_bounds = array<i64: 1, 16, 128>}]} {
    %c0 = arith.constant 0 : index
    %c0_0 = arith.constant 0 : index
    %c0_1 = arith.constant 0 : index
    %0 = vector.load %arg2[%c0, %c0_0, %c0_1] : memref<1x16x128xbf16, #tpu.memory_space<vmem>>, vector<1x16x128xbf16>
    %1 = vector.shape_cast %0 : vector<1x16x128xbf16> to vector<16x128xbf16>
    %2 = arith.extf %1 : vector<16x128xbf16> to vector<16x128xf32>
    %c0_2 = arith.constant 0 : index
    %c0_3 = arith.constant 0 : index
    %c0_4 = arith.constant 0 : index
    %3 = vector.load %arg3[%c0_2, %c0_3, %c0_4] : memref<1x8x128xbf16, #tpu.memory_space<vmem>>, vector<1x8x128xbf16>
    %4 = vector.shape_cast %3 : vector<1x8x128xbf16> to vector<8x128xbf16>
    %5 = arith.extf %4 : vector<8x128xbf16> to vector<8x128xf32>
    %6 = tpu.concatenate %2, %5 in 0 : vector<16x128xf32>, vector<8x128xf32> -> vector<24x128xf32>
    %c23_i32 = arith.constant 23 : i32
    %7 = tpu.dynamic_rotate %6 by %c23_i32 dim 0 : vector<24x128xf32>, i32 -> vector<24x128xf32>
    %8 = vector.extract_strided_slice %7 {offsets = [0, 0], sizes = [16, 128], strides = [1, 1]} : vector<24x128xf32> to vector<16x128xf32>
    %9 = arith.truncf %8 : vector<16x128xf32> to vector<16x128xbf16>
    %c22_i32 = arith.constant 22 : i32
    %10 = tpu.dynamic_rotate %6 by %c22_i32 dim 0 : vector<24x128xf32>, i32 -> vector<24x128xf32>
    %11 = vector.extract_strided_slice %10 {offsets = [0, 0], sizes = [16, 128], strides = [1, 1]} : vector<24x128xf32> to vector<16x128xf32>
    %12 = arith.truncf %11 : vector<16x128xf32> to vector<16x128xbf16>
    %13 = tpu.concatenate %1, %9, %12 in 1 : vector<16x128xbf16>, vector<16x128xbf16>, vector<16x128xbf16> -> vector<16x384xbf16>
    %c0_5 = arith.constant 0 : index
    %c0_6 = arith.constant 0 : index
    %14 = vector.load %arg4[%c0_5, %c0_6] : memref<384x128xbf16, #tpu.memory_space<vmem>>, vector<384x128xbf16>
    %cst = arith.constant dense<0.000000e+00> : vector<16x128xf32>
    %15 = tpu.matmul %13, %14, %cst {dimension_numbers = #tpu.dot_dimension_numbers<[1], [0], [0], [1], [0, 0, 1, 1], [], []>} : vector<16x384xbf16>, vector<384x128xbf16>, vector<16x128xf32> -> vector<16x128xf32>
    %c0_7 = arith.constant 0 : index
    %c0_8 = arith.constant 0 : index
    %16 = vector.load %arg5[%c0_7, %c0_8] : memref<1x128xf32, #tpu.memory_space<vmem>>, vector<1x128xf32>
    %17 = vector.broadcast %16 : vector<1x128xf32> to vector<16x128xf32>
    %18 = arith.addf %15, %17 : vector<16x128xf32>
    %cst_9 = arith.constant 0.000000e+00 : f32
    %19 = vector.broadcast %cst_9 : f32 to vector<16x128xf32>
    %20 = arith.maximumf %18, %19 : vector<16x128xf32>
    %21 = arith.truncf %20 : vector<16x128xf32> to vector<16x128xbf16>
    %c0_10 = arith.constant 0 : index
    %c0_11 = arith.constant 0 : index
    %22 = vector.load %arg6[%c0_10, %c0_11] : memref<128x128xbf16, #tpu.memory_space<vmem>>, vector<128x128xbf16>
    %cst_12 = arith.constant dense<0.000000e+00> : vector<16x128xf32>
    %23 = tpu.matmul %21, %22, %cst_12 {dimension_numbers = #tpu.dot_dimension_numbers<[1], [0], [0], [1], [0, 0, 1, 1], [], []>} : vector<16x128xbf16>, vector<128x128xbf16>, vector<16x128xf32> -> vector<16x128xf32>
    %c0_13 = arith.constant 0 : index
    %c0_14 = arith.constant 0 : index
    %24 = vector.load %arg7[%c0_13, %c0_14] : memref<1x128xf32, #tpu.memory_space<vmem>>, vector<1x128xf32>
    %25 = vector.broadcast %24 : vector<1x128xf32> to vector<16x128xf32>
    %26 = arith.addf %23, %25 : vector<16x128xf32>
    %c0_15 = arith.constant 0 : index
    %c0_16 = arith.constant 0 : index
    %c0_17 = arith.constant 0 : index
    %27 = vector.load %arg8[%c0_15, %c0_16, %c0_17] : memref<1x16x128xf32, #tpu.memory_space<vmem>>, vector<1x16x128xf32>
    %28 = vector.shape_cast %27 : vector<1x16x128xf32> to vector<16x128xf32>
    %29 = vector.shape_cast %26 : vector<16x128xf32> to vector<1x16x128xf32>
    tpu.vector_store %arg8[%c0_15, %c0_16, %c0_17], %29 {strides = array<i32>} : memref<1x16x128xf32, #tpu.memory_space<vmem>>, vector<1x16x128xf32>,
    return
  }
  func.func @transform_0(%arg0: i32, %arg1: i32) -> (i32, i32, i32) {
    %c0_i32 = arith.constant 0 : i32
    %c0_i32_0 = arith.constant 0 : i32
    return %arg0, %arg1, %c0_i32 : i32, i32, i32
  }
  func.func @transform_1(%arg0: i32, %arg1: i32) -> (i32, i32, i32) {
    %c1_i32 = arith.constant 1 : i32
    %0 = arith.addi %arg1, %c1_i32 : i32
    %c2_i32 = arith.constant 2 : i32
    %1 = arith.muli %0, %c2_i32 : i32
    %c0_i32 = arith.constant 0 : i32
    %c0_i32_0 = arith.constant 0 : i32
    return %arg0, %1, %c0_i32 : i32, i32, i32
  }
  func.func @transform_2(%arg0: i32, %arg1: i32) -> (i32, i32) {
    %c0_i32 = arith.constant 0 : i32
    %c0_i32_0 = arith.constant 0 : i32
    %c0_i32_1 = arith.constant 0 : i32
    return %c0_i32, %c0_i32_0 : i32, i32
  }
  func.func @transform_3(%arg0: i32, %arg1: i32) -> (i32, i32) {
    %c0_i32 = arith.constant 0 : i32
    %c0_i32_0 = arith.constant 0 : i32
    %c0_i32_1 = arith.constant 0 : i32
    return %c0_i32, %c0_i32_0 : i32, i32
  }
  func.func @transform_4(%arg0: i32, %arg1: i32) -> (i32, i32) {
    %c0_i32 = arith.constant 0 : i32
    %c0_i32_0 = arith.constant 0 : i32
    %c0_i32_1 = arith.constant 0 : i32
    return %c0_i32, %c0_i32_0 : i32, i32
  }
  func.func @transform_5(%arg0: i32, %arg1: i32) -> (i32, i32) {
    %c0_i32 = arith.constant 0 : i32
    %c0_i32_0 = arith.constant 0 : i32
    %c0_i32_1 = arith.constant 0 : i32
    return %c0_i32, %c0_i32_0 : i32, i32
  }
  func.func @transform_6(%arg0: i32, %arg1: i32) -> (i32, i32, i32) {
    %c0_i32 = arith.constant 0 : i32
    %c0_i32_0 = arith.constant 0 : i32
    return %arg0, %arg1, %c0_i32 : i32, i32, i32
  }
}

</mosaic_0001>

<llo_original>
// kernel: tpu_custom_call.1
$region0: #{tpu_custom_call.1}
  #allocation0 [shape = 'u32[]', space=smem, size = 0x4, offset = 0x4, fixed_abs, tag = 'smem constant byte address 0x4 - core index']
  #allocation1 [shape = 'u32[144,128]{1,0:T(1,128)}', space=vmem, size = 0x12000, scoped, tag = 'internal scratch']
  %s0 = inlined_call_operand.hbm [shape: bf16[2,24,128], index: 0, kind: input, shape index: {}]
  %s1 = inlined_call_operand.hbm [shape: bf16[2,24,128], index: 1, kind: input, shape index: {}]
  %s2 = inlined_call_operand.hbm [shape: bf16[384,128], index: 2, kind: input, shape index: {}]
  %s3 = inlined_call_operand.vmem [shape: f32[1,128], index: 3, kind: input, shape index: {}]
  %s4 = inlined_call_operand.hbm [shape: bf16[128,128], index: 4, kind: input, shape index: {}]
  %s5 = inlined_call_operand.vmem [shape: f32[1,128], index: 5, kind: input, shape index: {}]
  %s6 = inlined_call_operand.hbm [shape: f32[2,16,128], index: 6, kind: output, shape index: {}]
  %s7 = sld [smem:[#allocation0]]
  $region73: #{tpu_custom_call.1} parent=0
    _
  %s9 = ssub.s32 1, %s7
  %s10 = scalar_select 0, %s9, %s7
  $region1: #{tpu_custom_call.1} parent=0
    #allocation2 [shape = 'u8[8192]{0}', space=vmem, size = 0x2000, scoped, tag = 'input window, operand 0']
    #allocation3 [shape = 's32[2]{0}', space=sflag, size = 0x8, scoped, tag = 'scoped memory for tpu_custom_call.1']
    #allocation4 [shape = 's32[2]{0}', space=sflag, size = 0x8, scoped, tag = 'scoped memory for tpu_custom_call.1']
    #allocation5 [shape = 'u8[4096]{0}', space=vmem, size = 0x1000, scoped, tag = 'input window, operand 1']
    #allocation6 [shape = 's32[2]{0}', space=sflag, size = 0x8, scoped, tag = 'scoped memory for tpu_custom_call.1']
    #allocation7 [shape = 'u8[98304]{0}', space=vmem, size = 0x18000, scoped, tag = 'input window, operand 2, single buffered']
    #allocation8 [shape = 'u8[32768]{0}', space=vmem, size = 0x8000, scoped, tag = 'input window, operand 4, single buffered']
    #allocation9 [shape = 's32[1]{0}', space=sflag, size = 0x4, scoped, tag = 'scoped memory for tpu_custom_call.1']
    #allocation10 [shape = 'u8[16384]{0}', space=vmem, size = 0x4000, scoped, tag = 'output window, operand 0']
    %11 = vsyncpa [#allocation3], 0
    %s12 = scalar_lea.sflag [#allocation3], 1
    %13 = vsyncpa %s12, 0
    %14 = vsyncpa [#allocation6], 0
    %s15 = scalar_lea.sflag [#allocation6], 1
    %16 = vsyncpa %s15, 0
    %17 = vsyncpa [#allocation9], 0
    %18 = vsyncpa [#allocation4], 0
    %s19 = scalar_lea.sflag [#allocation4], 1
    %20 = vsyncpa %s19, 0
    loop: start=0, step=1, limit=4
    $region2: #{tpu_custom_call.1} parent=1 // loop_pre_header
      _
    $region3: #{tpu_custom_call.1} parent=1 // loop_header
      %s22 = sphi 0, %s26
      %p23 = scmp.ge.s32.totalorder %s22, 4
      %s29 = sphi 0, %s41
      %s30 = sphi 0, %s37
      %s31 = sphi 0, %s29
      %s32 = sphi 0, %s30
      %s33 = sphi 0, %s31
      %s34 = sphi 0, %s32
      %s46 = sphi 0, %s48
      %s49 = sphi 0, %s46
      %s50 = sphi 0, %s49
      %s66 = sphi 0, %s50
      %s78 = sphi 0, %s80
      %s81 = sphi 0, %s78
      %s82 = sphi 0, %s81
      %s98 = sphi 0, %s82
      %s102 = sphi 0, %s102
      %s104 = sphi 0, %s102
      %s105 = sphi 0, %s104
      %s119 = sphi 0, %s105
      %s123 = sphi 0, %s123
      %s125 = sphi 0, %s123
      %s126 = sphi 0, %s125
      %s140 = sphi 0, %s126
      %s144 = sphi 0, %s144
      %s146 = sphi 0, %s144
      %s147 = sphi 0, %s146
      %s161 = sphi 0, %s147
      %s165 = sphi 0, %s165
      %s167 = sphi 0, %s165
      %s168 = sphi 0, %s167
      %s182 = sphi 0, %s168
      %s190 = sphi 0, %s192
      %s193 = sphi 0, %s190
      %s194 = sphi 0, %s193
      %s210 = sphi 0, %s194
    $region4: #{tpu_custom_call.1} parent=1 // loop_header_branch
      %25 = sbr.rel (%p23) target = $region8
    $region5: #{tpu_custom_call.1} parent=1 // loop_body
      %s27 = ssub.s32 %s22, 1
      %s28 = ssub.s32 %s22, 2
      %s35 = sadd.s32 1, %s30
      %p36 = scmp.ge.s32.totalorder %s35, 1
      %s37 = scalar_select %p36, 0, %s35
      %s38 = sadd.s32 1, %s29
      %s39 = scalar_select %p36, %s38, %s29
      %p40 = scmp.ge.s32.totalorder %s39, 2
      %s41 = scalar_select %p40, 0, %s39
      %s42 = ssub.s32 %s29, %s41
      %s43 = ssub.s32 %s30, %s37
      %s44 = sor.u32 %s42, %s43
      %p45 = scmp.eq.s32.totalorder %s44, 0
      %s47 = sadd.s32 %s46, 1
      %s48 = scalar_select %p45, %s46, %s47
      %p51 = pneg %p45
      %p52 = scmp.eq.s32.totalorder %s22, 1
      %p53 = por %p51, %p52
      %p54 = scmp.ne.s32.totalorder %s46, %s49
      %p55 = scmp.eq.s32.totalorder %s22, 0
      %p56 = por %p54, %p55
      %p57 = scmp.ne.s32.totalorder %s46, %s49
      %p58 = scmp.eq.s32.totalorder %s27, 1
      %p59 = por %p57, %p58
      %p60 = scmp.ne.s32.totalorder %s49, %s50
      %p61 = scmp.eq.s32.totalorder %s27, 0
      %p62 = por %p60, %p61
      %p63 = scmp.ne.s32.totalorder %s49, %s50
      %p64 = scmp.eq.s32.totalorder %s28, 1
      %p65 = por %p63, %p64
      %p67 = scmp.ne.s32.totalorder %s50, %s66
      %p68 = scmp.eq.s32.totalorder %s28, 0
      %p69 = por %p67, %p68
      %s70 = sadd.s32 %s30, 1
      %s71 = smul.u32 %s70, 2
      %s72 = sadd.s32 %s37, 1
      %s73 = smul.u32 %s72, 2
      %s74 = ssub.s32 %s29, %s41
      %s75 = ssub.s32 %s71, %s73
      %s76 = sor.u32 %s74, %s75
      %p77 = scmp.eq.s32.totalorder %s76, 0
      %s79 = sadd.s32 %s78, 1
      %s80 = scalar_select %p77, %s78, %s79
      %p83 = pneg %p77
      %p84 = scmp.eq.s32.totalorder %s22, 1
      %p85 = por %p83, %p84
      %p86 = scmp.ne.s32.totalorder %s78, %s81
      %p87 = scmp.eq.s32.totalorder %s22, 0
      %p88 = por %p86, %p87
      %p89 = scmp.ne.s32.totalorder %s78, %s81
      %p90 = scmp.eq.s32.totalorder %s27, 1
      %p91 = por %p89, %p90
      %p92 = scmp.ne.s32.totalorder %s81, %s82
      %p93 = scmp.eq.s32.totalorder %s27, 0
      %p94 = por %p92, %p93
      %p95 = scmp.ne.s32.totalorder %s81, %s82
      %p96 = scmp.eq.s32.totalorder %s28, 1
      %p97 = por %p95, %p96
      %p99 = scmp.ne.s32.totalorder %s82, %s98
      %p100 = scmp.eq.s32.totalorder %s28, 0
      %p101 = por %p99, %p100
      %s103 = sadd.s32 %s102, 1
      %p106 = scmp.eq.s32.totalorder %s22, 1
      %p107 = scmp.ne.s32.totalorder %s102, %s104
      %p108 = scmp.eq.s32.totalorder %s22, 0
      %p109 = por %p107, %p108
      %p110 = scmp.ne.s32.totalorder %s102, %s104
      %p111 = scmp.eq.s32.totalorder %s27, 1
      %p112 = por %p110, %p111
      %p113 = scmp.ne.s32.totalorder %s104, %s105
      %p114 = scmp.eq.s32.totalorder %s27, 0
      %p115 = por %p113, %p114
      %p116 = scmp.ne.s32.totalorder %s104, %s105
      %p117 = scmp.eq.s32.totalorder %s28, 1
      %p118 = por %p116, %p117
      %p120 = scmp.ne.s32.totalorder %s105, %s119
      %p121 = scmp.eq.s32.totalorder %s28, 0
      %p122 = por %p120, %p121
      %s124 = sadd.s32 %s123, 1
      %p127 = scmp.eq.s32.totalorder %s22, 1
      %p128 = scmp.ne.s32.totalorder %s123, %s125
      %p129 = scmp.eq.s32.totalorder %s22, 0
      %p130 = por %p128, %p129
      %p131 = scmp.ne.s32.totalorder %s123, %s125
      %p132 = scmp.eq.s32.totalorder %s27, 1
      %p133 = por %p131, %p132
      %p134 = scmp.ne.s32.totalorder %s125, %s126
      %p135 = scmp.eq.s32.totalorder %s27, 0
      %p136 = por %p134, %p135
      %p137 = scmp.ne.s32.totalorder %s125, %s126
      %p138 = scmp.eq.s32.totalorder %s28, 1
      %p139 = por %p137, %p138
      %p141 = scmp.ne.s32.totalorder %s126, %s140
      %p142 = scmp.eq.s32.totalorder %s28, 0
      %p143 = por %p141, %p142
      %s145 = sadd.s32 %s144, 1
      %p148 = scmp.eq.s32.totalorder %s22, 1
      %p149 = scmp.ne.s32.totalorder %s144, %s146
      %p150 = scmp.eq.s32.totalorder %s22, 0
      %p151 = por %p149, %p150
      %p152 = scmp.ne.s32.totalorder %s144, %s146
      %p153 = scmp.eq.s32.totalorder %s27, 1
      %p154 = por %p152, %p153
      %p155 = scmp.ne.s32.totalorder %s146, %s147
      %p156 = scmp.eq.s32.totalorder %s27, 0
      %p157 = por %p155, %p156
      %p158 = scmp.ne.s32.totalorder %s146, %s147
      %p159 = scmp.eq.s32.totalorder %s28, 1
      %p160 = por %p158, %p159
      %p162 = scmp.ne.s32.totalorder %s147, %s161
      %p163 = scmp.eq.s32.totalorder %s28, 0
      %p164 = por %p162, %p163
      %s166 = sadd.s32 %s165, 1
      %p169 = scmp.eq.s32.totalorder %s22, 1
      %p170 = scmp.ne.s32.totalorder %s165, %s167
      %p171 = scmp.eq.s32.totalorder %s22, 0
      %p172 = por %p170, %p171
      %p173 = scmp.ne.s32.totalorder %s165, %s167
      %p174 = scmp.eq.s32.totalorder %s27, 1
      %p175 = por %p173, %p174
      %p176 = scmp.ne.s32.totalorder %s167, %s168
      %p177 = scmp.eq.s32.totalorder %s27, 0
      %p178 = por %p176, %p177
      %p179 = scmp.ne.s32.totalorder %s167, %s168
      %p180 = scmp.eq.s32.totalorder %s28, 1
      %p181 = por %p179, %p180
      %p183 = scmp.ne.s32.totalorder %s168, %s182
      %p184 = scmp.eq.s32.totalorder %s28, 0
      %p185 = por %p183, %p184
      %s186 = ssub.s32 %s29, %s41
      %s187 = ssub.s32 %s30, %s37
      %s188 = sor.u32 %s186, %s187
      %p189 = scmp.eq.s32.totalorder %s188, 0
      %s191 = sadd.s32 %s190, 1
      %s192 = scalar_select %p189, %s190, %s191
      %p195 = pneg %p189
      %p196 = scmp.eq.s32.totalorder %s22, 1
      %p197 = por %p195, %p196
      %p198 = scmp.ne.s32.totalorder %s190, %s193
      %p199 = scmp.eq.s32.totalorder %s22, 0
      %p200 = por %p198, %p199
      %p201 = scmp.ne.s32.totalorder %s190, %s193
      %p202 = scmp.eq.s32.totalorder %s27, 1
      %p203 = por %p201, %p202
      %p204 = scmp.ne.s32.totalorder %s193, %s194
      %p205 = scmp.eq.s32.totalorder %s27, 0
      %p206 = por %p204, %p205
      %p207 = scmp.ne.s32.totalorder %s193, %s194
      %p208 = scmp.eq.s32.totalorder %s28, 1
      %p209 = por %p207, %p208
      %p211 = scmp.ne.s32.totalorder %s194, %s210
      %p212 = scmp.eq.s32.totalorder %s28, 0
      %p213 = por %p211, %p212
      %p214 = scmp.le.s32.totalorder 1, %s22
      %p215 = scmp.lt.s32.totalorder %s22, 3
      %p216 = pnand %p214, %p215
      %p217 = pneg %p216
      // Predicated region
      $region9: #{tpu_custom_call.1} parent=5 // pred_check
        _
      $region10: #{tpu_custom_call.1} parent=5 // pred_check_branch
        %219 = sbr.rel (%p216) target = $region12
      $region11: #{tpu_custom_call.1} parent=5 // pred_region
        %s220 = ssub.s32 %s22, 1
        // Predicated region
        $region13: #{tpu_custom_call.1} parent=11 // pred_check
          %p221 = pneg %p115
        $region14: #{tpu_custom_call.1} parent=11 // pred_check_branch
          %223 = sbr.rel (%p221) target = $region16
        $region15: #{tpu_custom_call.1} parent=11 // pred_region
          %s225 = ssub.s32 3072, 3072
          %226 = vsyncadd [#allocation6], %s225
          %s227 = sshll.u32 [#allocation7], 4
          %s228 = int_to_ptr.vmem [resolvable:$true] %s227
          %233 = dma.hbm_to_vmem [thread:$0]  %s2, 3072, %s228, [#allocation6], 64, 64, 4
        $region16: #{tpu_custom_call.1} parent=11 // pred_fallthru
          _
        // Predicated region
        $region17: #{tpu_custom_call.1} parent=11 // pred_check
          %p234 = pneg %p136
        $region18: #{tpu_custom_call.1} parent=11 // pred_check_branch
          %236 = sbr.rel (%p234) target = $region20
        $region19: #{tpu_custom_call.1} parent=11 // pred_region
          _
        $region20: #{tpu_custom_call.1} parent=11 // pred_fallthru
          _
        // Predicated region
        $region21: #{tpu_custom_call.1} parent=11 // pred_check
          %p237 = pneg %p157
        $region22: #{tpu_custom_call.1} parent=11 // pred_check_branch
          %239 = sbr.rel (%p237) target = $region24
        $region23: #{tpu_custom_call.1} parent=11 // pred_region
          %s241 = ssub.s32 1024, 1024
          %242 = vsyncadd [#allocation9], %s241
          %s243 = sshll.u32 [#allocation8], 4
          %s244 = int_to_ptr.vmem [resolvable:$true] %s243
          %249 = dma.hbm_to_vmem [thread:$0]  %s4, 1024, %s244, [#allocation9], 64, 64, 4
        $region24: #{tpu_custom_call.1} parent=11 // pred_fallthru
          _
        // Predicated region
        $region25: #{tpu_custom_call.1} parent=11 // pred_check
          %p250 = pneg %p178
        $region26: #{tpu_custom_call.1} parent=11 // pred_check_branch
          %252 = sbr.rel (%p250) target = $region28
        $region27: #{tpu_custom_call.1} parent=11 // pred_region
          _
        $region28: #{tpu_custom_call.1} parent=11 // pred_fallthru
          _
      $region12: #{tpu_custom_call.1} parent=5 // pred_fallthru
        _
      %p253 = scmp.lt.s32.totalorder %s22, 2
      // Predicated region
      $region29: #{tpu_custom_call.1} parent=5 // pred_check
        %p254 = pneg %p253
      $region30: #{tpu_custom_call.1} parent=5 // pred_check_branch
        %256 = sbr.rel (%p254) target = $region32
      $region31: #{tpu_custom_call.1} parent=5 // pred_region
        // Predicated region
        $region33: #{tpu_custom_call.1} parent=31 // pred_check
          %p257 = pneg %p56
        $region34: #{tpu_custom_call.1} parent=31 // pred_check_branch
          %259 = sbr.rel (%p257) target = $region36
        $region35: #{tpu_custom_call.1} parent=31 // pred_region
          %s260 = sand.u32 %s46, 1
          %s261 = scalar_lea.sflag [#allocation3], %s260
          %s262 = sand.u32 %s46, 1
          %s263 = smul.addr %s262, 8
          %s264 = scalar_lea.vmem [#allocation2], %s263
          %s265 = smul.u32 2, %s30
          %s266 = ssub.s32 3, %s265
          %p267 = scmp.lt.s32.totalorder %s266, 2
          %s268 = scalar_select %p267, %s266, 2
          %s269 = smul.u32 64, %s268
          %s271 = ssub.s32 128, %s269
          %272 = vsyncadd %s261, %s271
          %p273 = scmp.ne.s32.totalorder 0, %s269
          %s274 = smul.addr %s29, 3
          %s275 = sadd.s32 %s265, %s274
          %s276 = smul.addr %s275, 64
          %s277 = scalar_lea.hbm %s0, %s276
          %s278 = smul.u32 4, %s268
          %s279 = sshll.u32 %s264, 4
          %s280 = int_to_ptr.vmem [resolvable:$true] %s279
          %s281 = sshll.u32 %s278, 4
          %285 = dma.hbm_to_vmem [thread:$0]  (%p273), %s277, %s281, %s280, %s261, 64, 64, 4
        $region36: #{tpu_custom_call.1} parent=31 // pred_fallthru
          _
        // Predicated region
        $region37: #{tpu_custom_call.1} parent=31 // pred_check
          %p286 = pneg %p88
        $region38: #{tpu_custom_call.1} parent=31 // pred_check_branch
          %288 = sbr.rel (%p286) target = $region40
        $region39: #{tpu_custom_call.1} parent=31 // pred_region
          %s289 = sand.u32 %s22, 1
          %s290 = scalar_lea.sflag [#allocation6], %s289
          %s291 = sand.u32 %s78, 1
          %s292 = smul.addr %s291, 4
          %s293 = scalar_lea.vmem [#allocation5], %s292
          %s294 = sadd.s32 %s30, 1
          %s295 = smul.u32 %s294, 2
          %s297 = ssub.s32 64, 64
          %298 = vsyncadd %s290, %s297
          %s299 = smul.addr %s29, 3
          %s300 = sadd.s32 %s295, %s299
          %s301 = smul.addr %s300, 64
          %s302 = scalar_lea.hbm %s1, %s301
          %s304 = sshll.u32 %s293, 4
          %s305 = int_to_ptr.vmem [resolvable:$true] %s304
          %307 = dma.hbm_to_vmem [thread:$0]  %s302, 64, %s305, %s290
        $region40: #{tpu_custom_call.1} parent=31 // pred_fallthru
          _
      $region32: #{tpu_custom_call.1} parent=5 // pred_fallthru
        _
      %p308 = scmp.le.s32.totalorder 1, %s22
      %p309 = scmp.lt.s32.totalorder %s22, 3
      %p310 = pnand %p308, %p309
      %p311 = pneg %p310
      // Predicated region
      $region41: #{tpu_custom_call.1} parent=5 // pred_check
        _
      $region42: #{tpu_custom_call.1} parent=5 // pred_check_branch
        %313 = sbr.rel (%p310) target = $region44
      $region43: #{tpu_custom_call.1} parent=5 // pred_region
        %s314 = ssub.s32 %s22, 1
        %s315 = sand.u32 %s49, 1
        %s316 = scalar_lea.sflag [#allocation3], %s315
        %s317 = sand.u32 %s49, 1
        %s318 = smul.addr %s317, 8
        %s319 = scalar_lea.vmem [#allocation2], %s318
        // Predicated region
        $region45: #{tpu_custom_call.1} parent=43 // pred_check
          %p320 = pneg %p62
        $region46: #{tpu_custom_call.1} parent=43 // pred_check_branch
          %322 = sbr.rel (%p320) target = $region48
        $region47: #{tpu_custom_call.1} parent=43 // pred_region
          %323 = dma.done %s316, 128
        $region48: #{tpu_custom_call.1} parent=43 // pred_fallthru
          _
        %s324 = sand.u32 %s27, 1
        %s325 = scalar_lea.sflag [#allocation6], %s324
        %s326 = sand.u32 %s81, 1
        %s327 = smul.addr %s326, 4
        %s328 = scalar_lea.vmem [#allocation5], %s327
        // Predicated region
        $region49: #{tpu_custom_call.1} parent=43 // pred_check
          %p329 = pneg %p94
        $region50: #{tpu_custom_call.1} parent=43 // pred_check_branch
          %331 = sbr.rel (%p329) target = $region52
        $region51: #{tpu_custom_call.1} parent=43 // pred_region
          %332 = dma.done %s325, 64
        $region52: #{tpu_custom_call.1} parent=43 // pred_fallthru
          _
        // Predicated region
        $region53: #{tpu_custom_call.1} parent=43 // pred_check
          %p333 = pneg %p115
        $region54: #{tpu_custom_call.1} parent=43 // pred_check_branch
          %335 = sbr.rel (%p333) target = $region56
        $region55: #{tpu_custom_call.1} parent=43 // pred_region
          %336 = dma.done [#allocation6], 3072
        $region56: #{tpu_custom_call.1} parent=43 // pred_fallthru
          _
        // Predicated region
        $region57: #{tpu_custom_call.1} parent=43 // pred_check
          %p337 = pneg %p157
        $region58: #{tpu_custom_call.1} parent=43 // pred_check_branch
          %339 = sbr.rel (%p337) target = $region60
        $region59: #{tpu_custom_call.1} parent=43 // pred_region
          %340 = dma.done [#allocation9], 1024
        $region60: #{tpu_custom_call.1} parent=43 // pred_fallthru
          _
        %s341 = sand.u32 %s49, 1
        %s342 = scalar_lea.sflag [#allocation3], %s341
        %s343 = sand.u32 %s49, 1
        %s344 = smul.addr %s343, 8
        %s345 = scalar_lea.vmem [#allocation2], %s344
        %p346 = pneg %p62
        %p347 = pneg %p59
        %s348 = sand.u32 %s27, 1
        %s349 = scalar_lea.sflag [#allocation6], %s348
        %s350 = sand.u32 %s81, 1
        %s351 = smul.addr %s350, 4
        %s352 = scalar_lea.vmem [#allocation5], %s351
        %p353 = pneg %p94
        %p354 = pneg %p91
        %p355 = pneg %p115
        %p356 = pneg %p112
        %p357 = pneg %p136
        %p358 = pneg %p133
        %p359 = pneg %p157
        %p360 = pneg %p154
        %p361 = pneg %p178
        %p362 = pneg %p175
        %p363 = pneg %p206
        %p364 = pneg %p203
        %s365 = sand.u32 %s193, 1
        %s366 = scalar_lea.sflag [#allocation4], %s365
        %s367 = sand.u32 %s193, 1
        %s368 = smul.addr %s367, 16
        %s369 = scalar_lea.vmem [#allocation10], %s368
        %s370 = smul.u32 2, %s32
        %s371 = ssub.s32 3, %s370
        %p372 = scmp.lt.s32.totalorder %s371, 2
        %s373 = scalar_select %p372, %s371, 2
        %s374 = smul.u32 64, %s373
        %s375 = sadd.s32 %s32, 1
        %s376 = smul.u32 %s375, 2
        %s377 = smul.u32 2, %s32
        %v379 = vld [vmem:[%s319] sm:$0xf]
        %v380 = vld [vmem:[%s319 + $0x4] sm:$0xf]
        %v381 = vunpack.c.l.bf16 %v379
        %v382 = vunpack.c.l.bf16 %v380
        %v383 = vld [vmem:[%s328] sm:$0xf]
        %v384 = vunpack.c.l.bf16 %v383
        %v385 = vrot.slane %v381, 1
        %v386 = vrot.slane %v382, 1
        %v387 = vrot.slane %v384, 1
        %v388 = vlaneseq
        %v389 = vshrl.u32 %v388, 7
        %vm390 = vcmp.lt.s32.totalorder %v389, 7
        %v391 = vsel %vm390, %v386, %v387
        %v392 = vsel %vm390, %v385, %v386
        %v393 = vpack.c.bf16 %v391, %v392
        %v394 = vrot.slane %v381, 2
        %v395 = vrot.slane %v382, 2
        %v396 = vrot.slane %v384, 2
        %vm397 = vcmp.lt.s32.totalorder %v389, 6
        %v398 = vsel %vm397, %v395, %v396
        %v399 = vsel %vm397, %v394, %v395
        %v400 = vpack.c.bf16 %v398, %v399
        %v403 = vunpack.c.l.b16 %v379
        %v404 = vunpack.c.l.b16 %v380
        %v405 = vpack.c.b16 %v404, %v403
        %v407 = vld [vmem:[#allocation7] sm:$0xf]
        %v408 = vld [vmem:[#allocation7 + $0x4] sm:$0xf]
        %v409 = vld [vmem:[#allocation7 + $0x8] sm:$0xf]
        %v410 = vld [vmem:[#allocation7 + $0xc] sm:$0xf]
        %v411 = vld [vmem:[#allocation7 + $0x10] sm:$0xf]
        %v412 = vld [vmem:[#allocation7 + $0x14] sm:$0xf]
        %v413 = vld [vmem:[#allocation7 + $0x18] sm:$0xf]
        %v414 = vld [vmem:[#allocation7 + $0x1c] sm:$0xf]
        %v415 = vld [vmem:[#allocation7 + $0x20] sm:$0xf]
        %v416 = vld [vmem:[#allocation7 + $0x24] sm:$0xf]
        %v417 = vld [vmem:[#allocation7 + $0x28] sm:$0xf]
        %v418 = vld [vmem:[#allocation7 + $0x2c] sm:$0xf]
        %v419 = vld [vmem:[#allocation7 + $0x30] sm:$0xf]
        %v420 = vld [vmem:[#allocation7 + $0x34] sm:$0xf]
        %v421 = vld [vmem:[#allocation7 + $0x38] sm:$0xf]
        %v422 = vld [vmem:[#allocation7 + $0x3c] sm:$0xf]
        %v423 = vld [vmem:[#allocation7 + $0x40] sm:$0xf]
        %v424 = vld [vmem:[#allocation7 + $0x44] sm:$0xf]
        %v425 = vld [vmem:[#allocation7 + $0x48] sm:$0xf]
        %v426 = vld [vmem:[#allocation7 + $0x4c] sm:$0xf]
        %v427 = vld [vmem:[#allocation7 + $0x50] sm:$0xf]
        %v428 = vld [vmem:[#allocation7 + $0x54] sm:$0xf]
        %v429 = vld [vmem:[#allocation7 + $0x58] sm:$0xf]
        %v430 = vld [vmem:[#allocation7 + $0x5c] sm:$0xf]
        %v431 = vld [vmem:[#allocation7 + $0x60] sm:$0xf]
        %v432 = vld [vmem:[#allocation7 + $0x64] sm:$0xf]
        %v433 = vld [vmem:[#allocation7 + $0x68] sm:$0xf]
        %v434 = vld [vmem:[#allocation7 + $0x6c] sm:$0xf]
        %v435 = vld [vmem:[#allocation7 + $0x70] sm:$0xf]
        %v436 = vld [vmem:[#allocation7 + $0x74] sm:$0xf]
        %v437 = vld [vmem:[#allocation7 + $0x78] sm:$0xf]
        %v438 = vld [vmem:[#allocation7 + $0x7c] sm:$0xf]
        %v439 = vld [vmem:[#allocation7 + $0x80] sm:$0xf]
        %v440 = vld [vmem:[#allocation7 + $0x84] sm:$0xf]
        %v441 = vld [vmem:[#allocation7 + $0x88] sm:$0xf]
        %v442 = vld [vmem:[#allocation7 + $0x8c] sm:$0xf]
        %v443 = vld [vmem:[#allocation7 + $0x90] sm:$0xf]
        %v444 = vld [vmem:[#allocation7 + $0x94] sm:$0xf]
        %v445 = vld [vmem:[#allocation7 + $0x98] sm:$0xf]
        %v446 = vld [vmem:[#allocation7 + $0x9c] sm:$0xf]
        %v447 = vld [vmem:[#allocation7 + $0xa0] sm:$0xf]
        %v448 = vld [vmem:[#allocation7 + $0xa4] sm:$0xf]
        %v449 = vld [vmem:[#allocation7 + $0xa8] sm:$0xf]
        %v450 = vld [vmem:[#allocation7 + $0xac] sm:$0xf]
        %v451 = vld [vmem:[#allocation7 + $0xb0] sm:$0xf]
        %v452 = vld [vmem:[#allocation7 + $0xb4] sm:$0xf]
        %v453 = vld [vmem:[#allocation7 + $0xb8] sm:$0xf]
        %v454 = vld [vmem:[#allocation7 + $0xbc] sm:$0xf]
        %v455 = vld [vmem:[%s3] sm:$0x1]
        %v457 = vlaneseq
        %v458 = vshrl.u32 %v457, 7
        %v459 = vsub.s32 0, %v458
        %v460 = vrot.slane %v455, %v459
        %v510 = vunpack.c.l.b16 %v407
        %v511 = vunpack.c.l.b16 %v408
        %v512 = vunpack.c.l.b16 %v409
        %v513 = vunpack.c.l.b16 %v410
        %v514 = vunpack.c.l.b16 %v411
        %v515 = vunpack.c.l.b16 %v412
        %v516 = vunpack.c.l.b16 %v413
        %v517 = vunpack.c.l.b16 %v414
        %v518 = vunpack.c.l.b16 %v415
        %v519 = vunpack.c.l.b16 %v416
        %v520 = vunpack.c.l.b16 %v417
        %v521 = vunpack.c.l.b16 %v418
        %v522 = vunpack.c.l.b16 %v419
        %v523 = vunpack.c.l.b16 %v420
        %v524 = vunpack.c.l.b16 %v421
        %v525 = vunpack.c.l.b16 %v422
        %v526 = vunpack.c.l.b16 %v423
        %v527 = vunpack.c.l.b16 %v424
        %v528 = vunpack.c.l.b16 %v425
        %v529 = vunpack.c.l.b16 %v426
        %v530 = vunpack.c.l.b16 %v427
        %v531 = vunpack.c.l.b16 %v428
        %v532 = vunpack.c.l.b16 %v429
        %v533 = vunpack.c.l.b16 %v430
        %v534 = vunpack.c.l.b16 %v431
        %v535 = vunpack.c.l.b16 %v432
        %v536 = vunpack.c.l.b16 %v433
        %v537 = vunpack.c.l.b16 %v434
        %v538 = vunpack.c.l.b16 %v435
        %v539 = vunpack.c.l.b16 %v436
        %v540 = vunpack.c.l.b16 %v437
        %v541 = vunpack.c.l.b16 %v438
        %v542 = vunpack.c.l.b16 %v439
        %v543 = vunpack.c.l.b16 %v440
        %v544 = vunpack.c.l.b16 %v441
        %v545 = vunpack.c.l.b16 %v442
        %v546 = vunpack.c.l.b16 %v443
        %v547 = vunpack.c.l.b16 %v444
        %v548 = vunpack.c.l.b16 %v445
        %v549 = vunpack.c.l.b16 %v446
        %v550 = vunpack.c.l.b16 %v447
        %v551 = vunpack.c.l.b16 %v448
        %v552 = vunpack.c.l.b16 %v449
        %v553 = vunpack.c.l.b16 %v450
        %v554 = vunpack.c.l.b16 %v451
        %v555 = vunpack.c.l.b16 %v452
        %v556 = vunpack.c.l.b16 %v453
        %v557 = vunpack.c.l.b16 %v454
        %v558 = vpack.c.b16 %v511, %v510
        %v559 = vpack.c.b16 %v513, %v512
        %v560 = vpack.c.b16 %v515, %v514
        %v561 = vpack.c.b16 %v517, %v516
        %v562 = vpack.c.b16 %v519, %v518
        %v563 = vpack.c.b16 %v521, %v520
        %v564 = vpack.c.b16 %v523, %v522
        %v565 = vpack.c.b16 %v525, %v524
        %v566 = vpack.c.b16 %v527, %v526
        %v567 = vpack.c.b16 %v529, %v528
        %v568 = vpack.c.b16 %v531, %v530
        %v569 = vpack.c.b16 %v533, %v532
        %v570 = vpack.c.b16 %v535, %v534
        %v571 = vpack.c.b16 %v537, %v536
        %v572 = vpack.c.b16 %v539, %v538
        %v573 = vpack.c.b16 %v541, %v540
        %v574 = vpack.c.b16 %v543, %v542
        %v575 = vpack.c.b16 %v545, %v544
        %v576 = vpack.c.b16 %v547, %v546
        %v577 = vpack.c.b16 %v549, %v548
        %v578 = vpack.c.b16 %v551, %v550
        %v579 = vpack.c.b16 %v553, %v552
        %v580 = vpack.c.b16 %v555, %v554
        %v581 = vpack.c.b16 %v557, %v556
        %606 = vmatprep.subr.bf16.mxu0 0
        %607 = vmatpush1.bf16.msra.mxu0 %v565
        %608 = vmatprep.subr.bf16.mxu0 0
        %609 = vmatpush1.bf16.msra.mxu0 %v564
        %610 = vmatprep.subr.bf16.mxu0 0
        %611 = vmatpush1.bf16.msra.mxu0 %v563
        %612 = vmatprep.subr.bf16.mxu0 0
        %613 = vmatpush1.bf16.msra.mxu0 %v562
        %614 = vmatprep.subr.bf16.mxu0 0
        %615 = vmatpush1.bf16.msra.mxu0 %v561
        %616 = vmatprep.subr.bf16.mxu0 0
        %617 = vmatpush1.bf16.msra.mxu0 %v560
        %618 = vmatprep.subr.bf16.mxu0 0
        %619 = vmatpush1.bf16.msra.mxu0 %v559
        %620 = vmatprep.subr.bf16.mxu0 0
        %621 = vmatpush1.bf16.msra.mxu0 %v558
        %622 = vmatprep.subr.bf16.mxu0 0
        %623 = vmatpush2.bf16.msra.mxu0 %v573
        %624 = vmatprep.subr.bf16.mxu0 0
        %625 = vmatpush2.bf16.msra.mxu0 %v572
        %626 = vmatprep.subr.bf16.mxu0 0
        %627 = vmatpush2.bf16.msra.mxu0 %v571
        %628 = vmatprep.subr.bf16.mxu0 0
        %629 = vmatpush2.bf16.msra.mxu0 %v570
        %630 = vmatprep.subr.bf16.mxu0 0
        %631 = vmatpush2.bf16.msra.mxu0 %v569
        %632 = vmatprep.subr.bf16.mxu0 0
        %633 = vmatpush2.bf16.msra.mxu0 %v568
        %634 = vmatprep.subr.bf16.mxu0 0
        %635 = vmatpush2.bf16.msra.mxu0 %v567
        %636 = vmatprep.subr.bf16.mxu0 0
        %637 = vmatpush2.bf16.msra.mxu0 %v566
        %638 = vmatprep.mubr.bf16.mxu0 %v393
        %639 = vmatmul.mubr.bf16.gmra.mxu0 %v405
        %v640 = vpop.f32.mrf.mxu0
        %v641 = vadd.f32 %v460, %v640
        %v642 = vpop.f32.mrf.mxu0
        %v643 = vpop.f32.mrf.mxu0
        %v644 = vadd.f32 %v460, %v643
        %v645 = vpop.f32.mrf.mxu0
        %646 = vdwg.mxu0
        %647 = vmatprep.subr.bf16.mxu0 0
        %648 = vmatpush1.bf16.msra.mxu0 %v581
        %649 = vmatprep.subr.bf16.mxu0 0
        %650 = vmatpush1.bf16.msra.mxu0 %v580
        %651 = vmatprep.subr.bf16.mxu0 0
        %652 = vmatpush1.bf16.msra.mxu0 %v579
        %653 = vmatprep.subr.bf16.mxu0 0
        %654 = vmatpush1.bf16.msra.mxu0 %v578
        %655 = vmatprep.subr.bf16.mxu0 0
        %656 = vmatpush1.bf16.msra.mxu0 %v577
        %657 = vmatprep.subr.bf16.mxu0 0
        %658 = vmatpush1.bf16.msra.mxu0 %v576
        %659 = vmatprep.subr.bf16.mxu0 0
        %660 = vmatpush1.bf16.msra.mxu0 %v575
        %661 = vmatprep.subr.bf16.mxu0 0
        %662 = vmatpush1.bf16.msra.mxu0 %v574
        %663 = vmatprep.subr.bf16.mxu0 0
        %664 = vmatpush2.bf16.msra.mxu0 0
        %665 = vmatprep.subr.bf16.mxu0 0
        %666 = vmatpush2.bf16.msra.mxu0 0
        %667 = vmatprep.subr.bf16.mxu0 0
        %668 = vmatpush2.bf16.msra.mxu0 0
        %669 = vmatprep.subr.bf16.mxu0 0
        %670 = vmatpush2.bf16.msra.mxu0 0
        %671 = vmatprep.subr.bf16.mxu0 0
        %672 = vmatpush2.bf16.msra.mxu0 0
        %673 = vmatprep.subr.bf16.mxu0 0
        %674 = vmatpush2.bf16.msra.mxu0 0
        %675 = vmatprep.subr.bf16.mxu0 0
        %676 = vmatpush2.bf16.msra.mxu0 0
        %677 = vmatprep.subr.bf16.mxu0 0
        %678 = vmatpush2.bf16.msra.mxu0 0
        %679 = vmatprep.mubr.bf16.mxu0 0
        %680 = vmatmul.mubr.bf16.gmra.mxu0 %v400
        %v681 = vpop.f32.mrf.mxu0
        %v682 = vadd.f32 %v641, %v681
        %v683 = vpop.f32.mrf.mxu0
        %v684 = vpop.f32.mrf.mxu0
        %v685 = vadd.f32 %v644, %v684
        %v686 = vpop.f32.mrf.mxu0
        %687 = vdwg.mxu0
        %v688 = vmax.f32 %v682, 0.0
        %v689 = vmax.f32 %v685, 0.0
        %v690 = vpack.c.bf16 %v689, %v688
        %v691 = vld [vmem:[#allocation8] sm:$0xf]
        %v692 = vld [vmem:[#allocation8 + $0x4] sm:$0xf]
        %v693 = vld [vmem:[#allocation8 + $0x8] sm:$0xf]
        %v694 = vld [vmem:[#allocation8 + $0xc] sm:$0xf]
        %v695 = vld [vmem:[#allocation8 + $0x10] sm:$0xf]
        %v696 = vld [vmem:[#allocation8 + $0x14] sm:$0xf]
        %v697 = vld [vmem:[#allocation8 + $0x18] sm:$0xf]
        %v698 = vld [vmem:[#allocation8 + $0x1c] sm:$0xf]
        %v699 = vld [vmem:[#allocation8 + $0x20] sm:$0xf]
        %v700 = vld [vmem:[#allocation8 + $0x24] sm:$0xf]
        %v701 = vld [vmem:[#allocation8 + $0x28] sm:$0xf]
        %v702 = vld [vmem:[#allocation8 + $0x2c] sm:$0xf]
        %v703 = vld [vmem:[#allocation8 + $0x30] sm:$0xf]
        %v704 = vld [vmem:[#allocation8 + $0x34] sm:$0xf]
        %v705 = vld [vmem:[#allocation8 + $0x38] sm:$0xf]
        %v706 = vld [vmem:[#allocation8 + $0x3c] sm:$0xf]
        %v707 = vld [vmem:[%s5] sm:$0x1]
        %v709 = vlaneseq
        %v710 = vshrl.u32 %v709, 7
        %v711 = vsub.s32 0, %v710
        %v712 = vrot.slane %v707, %v711
        %v730 = vunpack.c.l.b16 %v691
        %v731 = vunpack.c.l.b16 %v692
        %v732 = vunpack.c.l.b16 %v693
        %v733 = vunpack.c.l.b16 %v694
        %v734 = vunpack.c.l.b16 %v695
        %v735 = vunpack.c.l.b16 %v696
        %v736 = vunpack.c.l.b16 %v697
        %v737 = vunpack.c.l.b16 %v698
        %v738 = vunpack.c.l.b16 %v699
        %v739 = vunpack.c.l.b16 %v700
        %v740 = vunpack.c.l.b16 %v701
        %v741 = vunpack.c.l.b16 %v702
        %v742 = vunpack.c.l.b16 %v703
        %v743 = vunpack.c.l.b16 %v704
        %v744 = vunpack.c.l.b16 %v705
        %v745 = vunpack.c.l.b16 %v706
        %v746 = vpack.c.b16 %v731, %v730
        %v747 = vpack.c.b16 %v733, %v732
        %v748 = vpack.c.b16 %v735, %v734
        %v749 = vpack.c.b16 %v737, %v736
        %v750 = vpack.c.b16 %v739, %v738
        %v751 = vpack.c.b16 %v741, %v740
        %v752 = vpack.c.b16 %v743, %v742
        %v753 = vpack.c.b16 %v745, %v744
        %762 = vmatprep.subr.bf16.mxu0 0
        %763 = vmatpush1.bf16.msra.mxu0 %v753
        %764 = vmatprep.subr.bf16.mxu0 0
        %765 = vmatpush1.bf16.msra.mxu0 %v752
        %766 = vmatprep.subr.bf16.mxu0 0
        %767 = vmatpush1.bf16.msra.mxu0 %v751
        %768 = vmatprep.subr.bf16.mxu0 0
        %769 = vmatpush1.bf16.msra.mxu0 %v750
        %770 = vmatprep.subr.bf16.mxu0 0
        %771 = vmatpush1.bf16.msra.mxu0 %v749
        %772 = vmatprep.subr.bf16.mxu0 0
        %773 = vmatpush1.bf16.msra.mxu0 %v748
        %774 = vmatprep.subr.bf16.mxu0 0
        %775 = vmatpush1.bf16.msra.mxu0 %v747
        %776 = vmatprep.subr.bf16.mxu0 0
        %777 = vmatpush1.bf16.msra.mxu0 %v746
        %778 = vmatprep.subr.bf16.mxu0 0
        %779 = vmatpush2.bf16.msra.mxu0 0
        %780 = vmatprep.subr.bf16.mxu0 0
        %781 = vmatpush2.bf16.msra.mxu0 0
        %782 = vmatprep.subr.bf16.mxu0 0
        %783 = vmatpush2.bf16.msra.mxu0 0
        %784 = vmatprep.subr.bf16.mxu0 0
        %785 = vmatpush2.bf16.msra.mxu0 0
        %786 = vmatprep.subr.bf16.mxu0 0
        %787 = vmatpush2.bf16.msra.mxu0 0
        %788 = vmatprep.subr.bf16.mxu0 0
        %789 = vmatpush2.bf16.msra.mxu0 0
        %790 = vmatprep.subr.bf16.mxu0 0
        %791 = vmatpush2.bf16.msra.mxu0 0
        %792 = vmatprep.subr.bf16.mxu0 0
        %793 = vmatpush2.bf16.msra.mxu0 0
        %794 = vmatprep.mubr.bf16.mxu0 0
        %795 = vmatmul.mubr.bf16.gmra.mxu0 %v690
        %v796 = vpop.f32.mrf.mxu0
        %v797 = vadd.f32 %v712, %v796
        %v798 = vpop.f32.mrf.mxu0
        %v799 = vpop.f32.mrf.mxu0
        %v800 = vadd.f32 %v712, %v799
        %v801 = vpop.f32.mrf.mxu0
        %802 = vdwg.mxu0
        %803 = vst [vmem:[%s369] sm:$0xff] %v797
        %804 = vst [vmem:[%s369 + $0x8] sm:$0xff] %v800
        %s805 = sand.u32 %s193, 1
        %s806 = scalar_lea.sflag [#allocation4], %s805
        %s807 = sand.u32 %s193, 1
        %s808 = smul.addr %s807, 16
        %s809 = scalar_lea.vmem [#allocation10], %s808
        // Predicated region
        $region61: #{tpu_custom_call.1} parent=43 // pred_check
          %p810 = pneg %p203
        $region62: #{tpu_custom_call.1} parent=43 // pred_check_branch
          %812 = sbr.rel (%p810) target = $region64
        $region63: #{tpu_custom_call.1} parent=43 // pred_region
          %s813 = smul.u32 2, %s32
          %s815 = ssub.s32 256, 256
          %816 = vsyncadd %s806, %s815
          %s817 = smul.addr %s31, 2
          %s818 = sadd.s32 %s813, %s817
          %s819 = smul.addr %s818, 128
          %s820 = scalar_lea.hbm %s6, %s819
          %s821 = sshll.u32 %s809, 4
          %s822 = int_to_ptr.vmem [resolvable:$true] %s821
          %827 = dma.vmem_to_hbm [thread:$0]  %s822, 256, %s820, %s806, 128, 128, 8
        $region64: #{tpu_custom_call.1} parent=43 // pred_fallthru
          _
      $region44: #{tpu_custom_call.1} parent=5 // pred_fallthru
        _
      %p828 = scmp.le.s32.totalorder 2, %s22
      // Predicated region
      $region65: #{tpu_custom_call.1} parent=5 // pred_check
        %p829 = pneg %p828
      $region66: #{tpu_custom_call.1} parent=5 // pred_check_branch
        %831 = sbr.rel (%p829) target = $region68
      $region67: #{tpu_custom_call.1} parent=5 // pred_region
        %s832 = ssub.s32 %s22, 2
        // Predicated region
        $region69: #{tpu_custom_call.1} parent=67 // pred_check
          %p833 = pneg %p209
        $region70: #{tpu_custom_call.1} parent=67 // pred_check_branch
          %835 = sbr.rel (%p833) target = $region72
        $region71: #{tpu_custom_call.1} parent=67 // pred_region
          %s836 = sand.u32 %s194, 1
          %s837 = scalar_lea.sflag [#allocation4], %s836
          %s838 = sand.u32 %s194, 1
          %s839 = smul.addr %s838, 16
          %s840 = scalar_lea.vmem [#allocation10], %s839
          %841 = dma.done %s837, 256
        $region72: #{tpu_custom_call.1} parent=67 // pred_fallthru
          _
      $region68: #{tpu_custom_call.1} parent=5 // pred_fallthru
        _
    $region6: #{tpu_custom_call.1} parent=1 // loop_footer
      %s26 = sadd.s32 1, %s22
    $region7: #{tpu_custom_call.1} parent=1 // loop_footer_branch
      %21 = sbr.rel target = $region3
    $region8: #{tpu_custom_call.1} parent=1 // loop_exit
      _
    %842 = vsyncpa [#allocation3], 1
    %s843 = scalar_lea.sflag [#allocation3], 1
    %844 = vsyncpa %s843, 1
    %845 = vsyncpa [#allocation6], 1
    %s846 = scalar_lea.sflag [#allocation6], 1
    %847 = vsyncpa %s846, 1
    %848 = vsyncpa [#allocation9], 1
    %849 = vsyncpa [#allocation4], 1
    %s850 = scalar_lea.sflag [#allocation4], 1
    %851 = vsyncpa %s850, 1

</llo_original>
